<compile_context>
chip_gen: v5e
topology: v5e:2x2
jax: 0.10.0
libtpu: 0.0.40
codegen_flags: <defaults>
</compile_context>

<pallas_src>
import functools

import jax
import jax.numpy as jnp
from jax import lax
from jax.experimental import pallas as pl
from jax.experimental.pallas import tpu as pltpu


def _round_up(x, m):
    return (x + m - 1) // m * m


# ------------------------------ Pallas kernel -------------------------------

def _make_kernel(K, pad_left, Lp, cin_pad):
    def kernel(x_ref, w_ref, b_ref, o_ref):
        # x_ref: (cin_pad, NB*Lp)   compute dtype, lane-dense (batch folded in lanes)
        # w_ref: (Cout, K*cin_pad)  compute dtype, column index = k*cin_pad + ci
        # b_ref: (Cout, 1)          float32
        # o_ref: (Cout, NB*Lp)      float32 lane-dense output slab
        lanes = x_ref.shape[1]
        x = x_ref[...]

        # Lane position inside its own batch element (hoisted out of the tap loop).
        pos = lax.broadcasted_iota(jnp.int32, (cin_pad, lanes), 1) % Lp

        chunks = []
        for k in range(K):                       # static unroll over kernel taps
            s = k - pad_left                     # input shift of tap k
            if s == 0:
                shifted = x
            else:
                # result[:, l] = x[:, l + s]; wrap-around / cross-element lanes
                # are masked to zero below == ConstantPad1d's zero padding.
                shifted = pltpu.roll(x, shift=(-s) % lanes, axis=1)
                if s < 0:
                    valid = pos >= -s            # left pad region
                else:
                    valid = pos < (Lp - s)       # right pad region
                shifted = jnp.where(valid, shifted, jnp.zeros_like(shifted))
            chunks.append(shifted)               # (cin_pad, lanes), tile-aligned

        # im2col LHS^T: (K*cin_pad, lanes); all concat seams are sublane-tile
        # aligned because cin_pad is a multiple of the native tile height.
        im2col = jnp.concatenate(chunks, axis=0) if K > 1 else chunks[0]

        # Single MXU pass for all taps / channels / NB batch elements.
        acc = jnp.dot(w_ref[...], im2col, preferred_element_type=jnp.float32)
        o_ref[...] = (acc + b_ref[...]).astype(o_ref.dtype)

    return kernel


def _pick_batch_block(N, Lp, cin_pad, K, cout, itemsize, min_steps):
    """Largest per-step batch block NB that (a) leaves >= min_steps grid steps
    (megacore on v7x) and (b) keeps the per-step VMEM footprint comfortably
    under the default scoped VMEM budget."""
    budget = 20 * 1024 * 1024
    best = 1
    for nb in range(1, N + 1):
        if N % nb:
            continue
        lanes = nb * Lp
        est = (2 * cin_pad * lanes * itemsize          # x block (double buffered)
               + 2 * cout * lanes * 4                  # out block (double buffered)
               + 2 * K * cin_pad * lanes * itemsize    # tap chunks + im2col
               + cout * lanes * 4)                     # f32 accumulator
        if est > budget:
            continue
        if (N // nb) >= min_steps or nb == 1:
            best = nb
    return best


# --------------------------------- wrapper -----------------------------------

def conv_unit(x, weight, bias, *, compute_dtype=jnp.bfloat16, min_steps=2):
    """ConvUnit forward.

    x:      (N, Cin, L)    float32 (PyTorch NCL layout)
    weight: (Cout, Cin, K) PyTorch Conv1d weight
    bias:   (Cout,)
    returns (N, Cout, L)   in x.dtype (accumulation is always f32)
    """
    N, Cin, L = x.shape
    Cout, _, K = weight.shape
    pad_left = (K - 1) // 2

    itemsize = jnp.dtype(compute_dtype).itemsize
    sublane = 8 * (4 // itemsize)            # 8 rows for f32, 16 rows for bf16
    cin_pad = _round_up(Cin, sublane)
    Lp = _round_up(L, 128)                   # keep the output store lane-dense

    nb = _pick_batch_block(N, Lp, cin_pad, K, Cout, itemsize, min_steps)
    steps = N // nb
    lanes = nb * Lp

    # --- wrapper-side layout plumbing (each a single fused XLA copy) --------
    # x: (N, Cin, L) -> zero-pad channels / length -> (cin_pad, N*Lp), lane-dense.
    x2 = jnp.pad(x, ((0, 0), (0, cin_pad - Cin), (0, Lp - L)))
    x2 = jnp.transpose(x2, (1, 0, 2)).reshape(cin_pad, N * Lp).astype(compute_dtype)
    # weight: (Cout, Cin, K) -> (Cout, K*cin_pad), column index = k*cin_pad + ci.
    w2 = jnp.pad(jnp.transpose(weight, (0, 2, 1)),
                 ((0, 0), (0, 0), (0, cin_pad - Cin)))
    w2 = w2.reshape(Cout, K * cin_pad).astype(compute_dtype)
    b2 = bias.reshape(Cout, 1).astype(jnp.float32)

    cost = pl.CostEstimate(
        flops=2 * N * Cout * K * Cin * L,
        transcendentals=0,
        bytes_accessed=(x.size * x.dtype.itemsize
                        + weight.size * weight.dtype.itemsize
                        + bias.size * bias.dtype.itemsize
                        + N * Cout * L * x.dtype.itemsize),
    )

    out2 = pl.pallas_call(
        _make_kernel(K, pad_left, Lp, cin_pad),
        out_shape=jax.ShapeDtypeStruct((Cout, N * Lp), x.dtype),
        grid=(steps,),
        in_specs=[
            pl.BlockSpec((cin_pad, lanes), lambda i: (0, i)),
            pl.BlockSpec((Cout, K * cin_pad), lambda i: (0, 0)),
            pl.BlockSpec((Cout, 1), lambda i: (0, 0)),
        ],
        out_specs=pl.BlockSpec((Cout, lanes), lambda i: (0, i)),
        compiler_params=pltpu.CompilerParams(
            dimension_semantics=("parallel",)),
        cost_estimate=cost,
    )(x2, w2, b2)

    # (Cout, N*Lp) -> (N, Cout, L): layout plumbing, fused by XLA.
    return jnp.transpose(out2.reshape(Cout, N, Lp), (1, 0, 2))[:, :, :L]


# ----------------------------- pure-JAX reference ----------------------------

def conv_unit_ref(x, weight, bias):
    """Direct transcription of ConstantPad1d(((K-1)//2, K//2), 0) + Conv1d."""
    K = weight.shape[2]
    L = x.shape[2]
    xp = jnp.pad(x, ((0, 0), (0, 0), ((K - 1) // 2, K // 2)))
    acc = jnp.zeros((x.shape[0], weight.shape[0], L), jnp.float32)
    for k in range(K):
        acc = acc + jnp.einsum('ncl,oc->nol', xp[:, :, k:k + L], weight[:, :, k])
    return acc + bias[None, :, None]


# ---------------------------------- main -------------------------------------

if __name__ == "__main__":
    key = jax.random.PRNGKey(0)

    # Odd / even K exercise both ConstantPad1d boundary cases; the bf16 configs
    # exercise batch-blocked lane folding and non-multiple-of-128 lengths.
    configs = [
        dict(N=2, Cin=4, Cout=8, K=5, L=128, dtype=jnp.float32),
        dict(N=2, Cin=4, Cout=8, K=4, L=128, dtype=jnp.float32),
        dict(N=4, Cin=4, Cout=8, K=5, L=128, dtype=jnp.bfloat16),
        dict(N=2, Cin=4, Cout=8, K=3, L=100, dtype=jnp.bfloat16),
    ]

    fwd = jax.jit(conv_unit, static_argnames=("compute_dtype", "min_steps"))
    for cfg in configs:
        N, Cin, Cout, K, L = cfg["N"], cfg["Cin"], cfg["Cout"], cfg["K"], cfg["L"]
        cdt = cfg["dtype"]
        key, kx, kw, kb = jax.random.split(key, 4)
        scale = 1.0 / float(Cin * K) ** 0.5
        x = jax.random.normal(kx, (N, Cin, L), jnp.float32)
        w = jax.random.uniform(kw, (Cout, Cin, K), jnp.float32, -scale, scale)
        b = jax.random.uniform(kb, (Cout,), jnp.float32, -scale, scale)

        out = fwd(x, w, b, compute_dtype=cdt)
        jax.block_until_ready(out)

        assert out.shape == (N, Cout, L), out.shape
        assert bool(jnp.all(jnp.isfinite(out)))

        # Reference on inputs rounded to the kernel's compute dtype (accumulation
        # is f32 in both), so the comparison isolates kernel correctness.
        xr = x.astype(cdt).astype(jnp.float32)
        wr = w.astype(cdt).astype(jnp.float32)
        ref = conv_unit_ref(xr, wr, b)
        tol = 1e-4 if cdt == jnp.float32 else 2e-3
        err = float(jnp.max(jnp.abs(out.astype(jnp.float32) - ref)))
        assert err <= tol, (cfg, err)

    print("KERNEL_OK")
</pallas_src>

<mosaic_0001>
module attributes {stable_mosaic.version = 11 : i64} {
  func.func @kernel(%arg0: i32, %arg1: memref<8x128xf32, #tpu.memory_space<vmem>>, %arg2: memref<8x40xf32, #tpu.memory_space<vmem>>, %arg3: memref<8x1xf32, #tpu.memory_space<vmem>>, %arg4: memref<8x128xf32, #tpu.memory_space<vmem>>) attributes {dimension_semantics = [#tpu.dimension_semantics<parallel>], iteration_bounds = array<i64: 2>, scalar_prefetch = 0 : i64, scratch_operands = 0 : i64, tpu.core_type = #tpu.core_type<tc>, window_params = [{transform_indices = @transform_0, window_bounds = array<i64: 8, 128>}, {pipeline_mode = #tpu.pipeline_mode<synchronous>, transform_indices = @transform_1, window_bounds = array<i64: 8, 40>}, {pipeline_mode = #tpu.pipeline_mode<synchronous>, transform_indices = @transform_2, window_bounds = array<i64: 8, 1>}, {transform_indices = @transform_3, window_bounds = array<i64: 8, 128>}]} {
    %c0 = arith.constant 0 : index
    %c0_0 = arith.constant 0 : index
    %0 = vector.load %arg1[%c0, %c0_0] : memref<8x128xf32, #tpu.memory_space<vmem>>, vector<8x128xf32>
    %1 = tpu.iota {dimensions = array<i32: 1>} : vector<8x128xi32>
    %c128_i32 = arith.constant 128 : i32
    %c0_i32 = arith.constant 0 : i32
    %2 = arith.cmpi eq, %c128_i32, %c0_i32 : i32
    %c1_i32 = arith.constant 1 : i32
    %3 = arith.select %2, %c1_i32, %c128_i32 : i32
    %4 = vector.broadcast %3 : i32 to vector<8x128xi32>
    %5 = arith.remsi %1, %4 : vector<8x128xi32>
    %c0_i32_1 = arith.constant 0 : i32
    %6 = vector.broadcast %c0_i32_1 : i32 to vector<8x128xi32>
    %7 = arith.cmpi ne, %5, %6 : vector<8x128xi32>
    %c0_i32_2 = arith.constant 0 : i32
    %8 = vector.broadcast %c0_i32_2 : i32 to vector<8x128xi32>
    %9 = arith.cmpi slt, %5, %8 : vector<8x128xi32>
    %c0_i32_3 = arith.constant 0 : i32
    %10 = arith.cmpi slt, %3, %c0_i32_3 : i32
    %11 = vector.broadcast %10 : i1 to vector<8x128xi1>
    %12 = vector.broadcast %11 : vector<8x128xi1> to vector<8x128xi1>
    %13 = arith.xori %9, %12 : vector<8x128xi1>
    %14 = arith.andi %13, %7 : vector<8x128xi1>
    %15 = vector.broadcast %3 : i32 to vector<8x128xi32>
    %16 = arith.addi %5, %15 : vector<8x128xi32>
    %17 = arith.select %14, %16, %5 : vector<8x128xi1>, vector<8x128xi32>
    %c2_i32 = arith.constant 2 : i32
    %18 = tpu.dynamic_rotate %0 by %c2_i32 dim 1 : vector<8x128xf32>, i32 -> vector<8x128xf32>
    %c2_i32_4 = arith.constant 2 : i32
    %19 = vector.broadcast %c2_i32_4 : i32 to vector<8x128xi32>
    %20 = arith.cmpi sge, %17, %19 : vector<8x128xi32>
    %cst = arith.constant 0.000000e+00 : f32
    %21 = vector.broadcast %cst : f32 to vector<8x128xf32>
    %22 = arith.select %20, %18, %21 : vector<8x128xi1>, vector<8x128xf32>
    %c1_i32_5 = arith.constant 1 : i32
    %23 = tpu.dynamic_rotate %0 by %c1_i32_5 dim 1 : vector<8x128xf32>, i32 -> vector<8x128xf32>
    %c1_i32_6 = arith.constant 1 : i32
    %24 = vector.broadcast %c1_i32_6 : i32 to vector<8x128xi32>
    %25 = arith.cmpi sge, %17, %24 : vector<8x128xi32>
    %cst_7 = arith.constant 0.000000e+00 : f32
    %26 = vector.broadcast %cst_7 : f32 to vector<8x128xf32>
    %27 = arith.select %25, %23, %26 : vector<8x128xi1>, vector<8x128xf32>
    %c127_i32 = arith.constant 127 : i32
    %28 = tpu.dynamic_rotate %0 by %c127_i32 dim 1 : vector<8x128xf32>, i32 -> vector<8x128xf32>
    %c127_i32_8 = arith.constant 127 : i32
    %29 = vector.broadcast %c127_i32_8 : i32 to vector<8x128xi32>
    %30 = arith.cmpi slt, %17, %29 : vector<8x128xi32>
    %cst_9 = arith.constant 0.000000e+00 : f32
    %31 = vector.broadcast %cst_9 : f32 to vector<8x128xf32>
    %32 = arith.select %30, %28, %31 : vector<8x128xi1>, vector<8x128xf32>
    %c126_i32 = arith.constant 126 : i32
    %33 = tpu.dynamic_rotate %0 by %c126_i32 dim 1 : vector<8x128xf32>, i32 -> vector<8x128xf32>
    %c126_i32_10 = arith.constant 126 : i32
    %34 = vector.broadcast %c126_i32_10 : i32 to vector<8x128xi32>
    %35 = arith.cmpi slt, %17, %34 : vector<8x128xi32>
    %cst_11 = arith.constant 0.000000e+00 : f32
    %36 = vector.broadcast %cst_11 : f32 to vector<8x128xf32>
    %37 = arith.select %35, %33, %36 : vector<8x128xi1>, vector<8x128xf32>
    %38 = tpu.concatenate %22, %27, %0, %32, %37 in 0 : vector<8x128xf32>, vector<8x128xf32>, vector<8x128xf32>, vector<8x128xf32>, vector<8x128xf32> -> vector<40x128xf32>
    %c0_12 = arith.constant 0 : index
    %c0_13 = arith.constant 0 : index
    %39 = vector.load %arg2[%c0_12, %c0_13] : memref<8x40xf32, #tpu.memory_space<vmem>>, vector<8x40xf32>
    %cst_14 = arith.constant dense<0.000000e+00> : vector<8x128xf32>
    %40 = tpu.matmul %39, %38, %cst_14 {dimension_numbers = #tpu.dot_dimension_numbers<[1], [0], [0], [1], [0, 0, 1, 1], [], []>} : vector<8x40xf32>, vector<40x128xf32>, vector<8x128xf32> -> vector<8x128xf32>
    %c0_15 = arith.constant 0 : index
    %c0_16 = arith.constant 0 : index
    %41 = vector.load %arg3[%c0_15, %c0_16] : memref<8x1xf32, #tpu.memory_space<vmem>>, vector<8x1xf32>
    %42 = vector.broadcast %41 : vector<8x1xf32> to vector<8x128xf32>
    %43 = arith.addf %40, %42 : vector<8x128xf32>
    %c0_17 = arith.constant 0 : index
    %c0_18 = arith.constant 0 : index
    %44 = vector.load %arg4[%c0_17, %c0_18] : memref<8x128xf32, #tpu.memory_space<vmem>>, vector<8x128xf32>
    tpu.vector_store %arg4[%c0_17, %c0_18], %43 {strides = array<i32>} : memref<8x128xf32, #tpu.memory_space<vmem>>, vector<8x128xf32>,
    return
  }
  func.func @transform_0(%arg0: i32) -> (i32, i32) {
    %c0_i32 = arith.constant 0 : i32
    %c0_i32_0 = arith.constant 0 : i32
    return %c0_i32, %arg0 : i32, i32
  }
  func.func @transform_1(%arg0: i32) -> (i32, i32) {
    %c0_i32 = arith.constant 0 : i32
    %c0_i32_0 = arith.constant 0 : i32
    %c0_i32_1 = arith.constant 0 : i32
    return %c0_i32, %c0_i32_0 : i32, i32
  }
  func.func @transform_2(%arg0: i32) -> (i32, i32) {
    %c0_i32 = arith.constant 0 : i32
    %c0_i32_0 = arith.constant 0 : i32
    %c0_i32_1 = arith.constant 0 : i32
    return %c0_i32, %c0_i32_0 : i32, i32
  }
  func.func @transform_3(%arg0: i32) -> (i32, i32) {
    %c0_i32 = arith.constant 0 : i32
    %c0_i32_0 = arith.constant 0 : i32
    return %c0_i32, %arg0 : i32, i32
  }
}

</mosaic_0001>

<llo_original>
// kernel: conv_unit.1
$region0: #{conv_unit.1}
  #allocation0 [shape = 'u32[]', space=smem, size = 0x4, offset = 0x4, fixed_abs, tag = 'smem constant byte address 0x4 - core index']
  #allocation1 [shape = 'u32[72,128]{1,0:T(1,128)}', space=vmem, size = 0x9000, scoped, tag = 'internal scratch']
  %s0 = inlined_call_operand.vmem [shape: f32[8,256], index: 0, kind: input, shape index: {}]
  %s1 = inlined_call_operand.vmem [shape: f32[8,40], index: 1, kind: input, shape index: {}]
  %s2 = inlined_call_operand.vmem [shape: f32[8,1], index: 2, kind: input, shape index: {}]
  %s3 = inlined_call_operand.hbm [shape: f32[8,256], index: 3, kind: output, shape index: {}]
  %s4 = sld [smem:[#allocation0]]
  $region45: #{conv_unit.1} parent=0
    _
  %s6 = ssub.s32 1, %s4
  %s7 = scalar_select 0, %s6, %s4
  $region1: #{conv_unit.1} parent=0
    #allocation2 [shape = 'u8[8192]{0}', space=vmem, size = 0x2000, scoped, tag = 'output window, operand 0']
    #allocation3 [shape = 's32[2]{0}', space=sflag, size = 0x8, scoped, tag = 'scoped memory for conv_unit.1']
    %8 = vsyncpa [#allocation3], 0
    %s9 = scalar_lea.sflag [#allocation3], 1
    %10 = vsyncpa %s9, 0
    loop: start=0, step=1, limit=4
    $region2: #{conv_unit.1} parent=1 // loop_pre_header
      _
    $region3: #{conv_unit.1} parent=1 // loop_header
      %s12 = sphi 0, %s16
      %p13 = scmp.ge.s32.totalorder %s12, 4
      %s22 = sphi 0, %s24
      %s25 = sphi 0, %s22
      %s26 = sphi 0, %s25
      %s42 = sphi 0, %s26
      %s46 = sphi 0, %s46
      %s48 = sphi 0, %s46
      %s49 = sphi 0, %s48
      %s63 = sphi 0, %s49
      %s67 = sphi 0, %s67
      %s69 = sphi 0, %s67
      %s70 = sphi 0, %s69
      %s84 = sphi 0, %s70
      %s90 = sphi 0, %s92
      %s93 = sphi 0, %s90
      %s94 = sphi 0, %s93
      %s110 = sphi 0, %s94
    $region4: #{conv_unit.1} parent=1 // loop_header_branch
      %15 = sbr.rel (%p13) target = $region8
    $region5: #{conv_unit.1} parent=1 // loop_body
      %s17 = ssub.s32 %s12, 1
      %s18 = ssub.s32 %s12, 2
      %s19 = sadd.s32 %s12, 1
      %s20 = ssub.s32 %s12, %s19
      %p21 = scmp.eq.s32.totalorder %s20, 0
      %s23 = sadd.s32 %s22, 1
      %s24 = scalar_select %p21, %s22, %s23
      %p27 = pneg %p21
      %p28 = scmp.eq.s32.totalorder %s12, 1
      %p29 = por %p27, %p28
      %p30 = scmp.ne.s32.totalorder %s22, %s25
      %p31 = scmp.eq.s32.totalorder %s12, 0
      %p32 = por %p30, %p31
      %p33 = scmp.ne.s32.totalorder %s22, %s25
      %p34 = scmp.eq.s32.totalorder %s17, 1
      %p35 = por %p33, %p34
      %p36 = scmp.ne.s32.totalorder %s25, %s26
      %p37 = scmp.eq.s32.totalorder %s17, 0
      %p38 = por %p36, %p37
      %p39 = scmp.ne.s32.totalorder %s25, %s26
      %p40 = scmp.eq.s32.totalorder %s18, 1
      %p41 = por %p39, %p40
      %p43 = scmp.ne.s32.totalorder %s26, %s42
      %p44 = scmp.eq.s32.totalorder %s18, 0
      %p45 = por %p43, %p44
      %s47 = sadd.s32 %s46, 1
      %p50 = scmp.eq.s32.totalorder %s12, 1
      %p51 = scmp.ne.s32.totalorder %s46, %s48
      %p52 = scmp.eq.s32.totalorder %s12, 0
      %p53 = por %p51, %p52
      %p54 = scmp.ne.s32.totalorder %s46, %s48
      %p55 = scmp.eq.s32.totalorder %s17, 1
      %p56 = por %p54, %p55
      %p57 = scmp.ne.s32.totalorder %s48, %s49
      %p58 = scmp.eq.s32.totalorder %s17, 0
      %p59 = por %p57, %p58
      %p60 = scmp.ne.s32.totalorder %s48, %s49
      %p61 = scmp.eq.s32.totalorder %s18, 1
      %p62 = por %p60, %p61
      %p64 = scmp.ne.s32.totalorder %s49, %s63
      %p65 = scmp.eq.s32.totalorder %s18, 0
      %p66 = por %p64, %p65
      %s68 = sadd.s32 %s67, 1
      %p71 = scmp.eq.s32.totalorder %s12, 1
      %p72 = scmp.ne.s32.totalorder %s67, %s69
      %p73 = scmp.eq.s32.totalorder %s12, 0
      %p74 = por %p72, %p73
      %p75 = scmp.ne.s32.totalorder %s67, %s69
      %p76 = scmp.eq.s32.totalorder %s17, 1
      %p77 = por %p75, %p76
      %p78 = scmp.ne.s32.totalorder %s69, %s70
      %p79 = scmp.eq.s32.totalorder %s17, 0
      %p80 = por %p78, %p79
      %p81 = scmp.ne.s32.totalorder %s69, %s70
      %p82 = scmp.eq.s32.totalorder %s18, 1
      %p83 = por %p81, %p82
      %p85 = scmp.ne.s32.totalorder %s70, %s84
      %p86 = scmp.eq.s32.totalorder %s18, 0
      %p87 = por %p85, %p86
      %s88 = ssub.s32 %s12, %s19
      %p89 = scmp.eq.s32.totalorder %s88, 0
      %s91 = sadd.s32 %s90, 1
      %s92 = scalar_select %p89, %s90, %s91
      %p95 = pneg %p89
      %p96 = scmp.eq.s32.totalorder %s12, 1
      %p97 = por %p95, %p96
      %p98 = scmp.ne.s32.totalorder %s90, %s93
      %p99 = scmp.eq.s32.totalorder %s12, 0
      %p100 = por %p98, %p99
      %p101 = scmp.ne.s32.totalorder %s90, %s93
      %p102 = scmp.eq.s32.totalorder %s17, 1
      %p103 = por %p101, %p102
      %p104 = scmp.ne.s32.totalorder %s93, %s94
      %p105 = scmp.eq.s32.totalorder %s17, 0
      %p106 = por %p104, %p105
      %p107 = scmp.ne.s32.totalorder %s93, %s94
      %p108 = scmp.eq.s32.totalorder %s18, 1
      %p109 = por %p107, %p108
      %p111 = scmp.ne.s32.totalorder %s94, %s110
      %p112 = scmp.eq.s32.totalorder %s18, 0
      %p113 = por %p111, %p112
      %p114 = scmp.le.s32.totalorder 1, %s12
      %p115 = scmp.lt.s32.totalorder %s12, 3
      %p116 = pnand %p114, %p115
      %p117 = pneg %p116
      // Predicated region
      $region9: #{conv_unit.1} parent=5 // pred_check
        _
      $region10: #{conv_unit.1} parent=5 // pred_check_branch
        %119 = sbr.rel (%p116) target = $region12
      $region11: #{conv_unit.1} parent=5 // pred_region
        %s120 = ssub.s32 %s12, 1
        // Predicated region
        $region13: #{conv_unit.1} parent=11 // pred_check
          %p121 = pneg %p59
        $region14: #{conv_unit.1} parent=11 // pred_check_branch
          %123 = sbr.rel (%p121) target = $region16
        $region15: #{conv_unit.1} parent=11 // pred_region
          _
        $region16: #{conv_unit.1} parent=11 // pred_fallthru
          _
        // Predicated region
        $region17: #{conv_unit.1} parent=11 // pred_check
          %p124 = pneg %p80
        $region18: #{conv_unit.1} parent=11 // pred_check_branch
          %126 = sbr.rel (%p124) target = $region20
        $region19: #{conv_unit.1} parent=11 // pred_region
          _
        $region20: #{conv_unit.1} parent=11 // pred_fallthru
          _
      $region12: #{conv_unit.1} parent=5 // pred_fallthru
        _
      %p127 = scmp.lt.s32.totalorder %s12, 2
      // Predicated region
      $region21: #{conv_unit.1} parent=5 // pred_check
        %p128 = pneg %p127
      $region22: #{conv_unit.1} parent=5 // pred_check_branch
        %130 = sbr.rel (%p128) target = $region24
      $region23: #{conv_unit.1} parent=5 // pred_region
        // Predicated region
        $region25: #{conv_unit.1} parent=23 // pred_check
          %p131 = pneg %p32
        $region26: #{conv_unit.1} parent=23 // pred_check_branch
          %133 = sbr.rel (%p131) target = $region28
        $region27: #{conv_unit.1} parent=23 // pred_region
          %p134 = scmp.lt.s32.totalorder %s12, 1
          %s135 = scalar_select %p134, %s12, 1
          %s136 = smul.addr %s135, 8
          %s137 = scalar_lea.vmem %s0, %s136
        $region28: #{conv_unit.1} parent=23 // pred_fallthru
          _
      $region24: #{conv_unit.1} parent=5 // pred_fallthru
        _
      %p138 = scmp.le.s32.totalorder 1, %s12
      %p139 = scmp.lt.s32.totalorder %s12, 3
      %p140 = pnand %p138, %p139
      %p141 = pneg %p140
      // Predicated region
      $region29: #{conv_unit.1} parent=5 // pred_check
        _
      $region30: #{conv_unit.1} parent=5 // pred_check_branch
        %143 = sbr.rel (%p140) target = $region32
      $region31: #{conv_unit.1} parent=5 // pred_region
        %s144 = ssub.s32 %s12, 1
        %p145 = scmp.lt.s32.totalorder %s17, 1
        %s146 = scalar_select %p145, %s17, 1
        %s147 = smul.addr %s146, 8
        %s148 = scalar_lea.vmem %s0, %s147
        %p149 = pneg %p38
        %p150 = pneg %p35
        %p151 = pneg %p59
        %p152 = pneg %p56
        %p153 = pneg %p80
        %p154 = pneg %p77
        %p155 = pneg %p106
        %p156 = pneg %p103
        %s157 = sand.u32 %s93, 1
        %s158 = scalar_lea.sflag [#allocation3], %s157
        %s159 = sand.u32 %s93, 1
        %s160 = smul.addr %s159, 8
        %s161 = scalar_lea.vmem [#allocation2], %s160
        %p162 = scmp.lt.s32.totalorder %s17, 1
        %s163 = scalar_select %p162, %s17, 1
        %s164 = smul.addr %s163, 8
        %s165 = scalar_lea.vmem %s0, %s164
        %v166 = vld [vmem:[%s165] sm:$0xff]
        %v167 = vlaneseq
        %v168 = vand.u32 %v167, 127
        %vm169 = vcmp.lt.s32.totalorder %v168, 0
        %v170 = vsub.s32 0, %v168
        %v171 = vsel %vm169, %v170, %v168
        %v172 = vshrl.u32 %v171, 7
        %v173 = vand.u32 %v171, 127
        %v174 = vsub.s32 0, %v173
        %v175 = vsel %vm169, %v174, %v173
        %vm176 = vcmp.ne.s32.totalorder %v175, 0
        %vm177 = vcmp.lt.s32.totalorder %v175, 0
        %vm178 = vmand %vm177, %vm176
        %v179 = vadd.s32 %v175, 128
        %v180 = vsel %vm178, %v179, %v175
        %181 = vrot.lane.b32.xlu0 %v166, 2
        %v182 = vpop.permute.xlu0 %181
        %vm183 = vcmp.ge.s32.totalorder %v180, 2
        %v184 = vsel %vm183, %v182, 0.0
        %185 = vrot.lane.b32.xlu0 %v166, 1
        %v186 = vpop.permute.xlu0 %185
        %vm187 = vcmp.ge.s32.totalorder %v180, 1
        %v188 = vsel %vm187, %v186, 0.0
        %189 = vrot.lane.b32.xlu0 %v166, 127
        %v190 = vpop.permute.xlu0 %189
        %vm191 = vcmp.lt.s32.totalorder %v180, 127
        %v192 = vsel %vm191, %v190, 0.0
        %193 = vrot.lane.b32.xlu0 %v166, 126
        %v194 = vpop.permute.xlu0 %193
        %vm195 = vcmp.lt.s32.totalorder %v180, 126
        %v196 = vsel %vm195, %v194, 0.0
        %v197 = vld [vmem:[%s1] sm:$0xff]
        %v198 = vld [vmem:[%s2] sm:$0xff]
        %200 = vset.pattern.permute.xlu0 0
        %201 = vperm.xlu0 %200, %v198
        %v202 = vpop.permute.xlu0 %201
        %vm204 = vcmask 326656
        %v206 = vsel %vm204, %v197, 0
        %208 = vmatpush.msra.mxu0 0.0
        %209 = vmatpush.msra.mxu0 0.0
        %210 = vmatpush.msra.mxu0 0.0
        %211 = vmatpush.msra.mxu0 0.0
        %212 = vmatpush.msra.mxu0 0.0
        %213 = vmatpush.msra.mxu0 0.0
        %214 = vmatpush.msra.mxu0 0.0
        %215 = vmatpush.msra.mxu0 0.0
        %216 = vmatpush.msra.mxu0 0.0
        %217 = vmatpush.msra.mxu0 0.0
        %218 = vmatpush.msra.mxu0 0.0
        %219 = vmatpush.msra.mxu0 %v196
        %220 = vmatpush.msra.mxu0 %v192
        %221 = vmatpush.msra.mxu0 %v166
        %222 = vmatpush.msra.mxu0 %v188
        %223 = vmatpush.msra.mxu0 %v184
        %224 = vmatmul.f32.gmra.mxu0 %v206
        %v225 = vpop.f32.mrf.mxu0
        %v226 = vadd.f32 %v202, %v225
        %227 = vdwg.mxu0
        %228 = vst [vmem:[%s161] sm:$0xff] %v226
        %s229 = sand.u32 %s93, 1
        %s230 = scalar_lea.sflag [#allocation3], %s229
        %s231 = sand.u32 %s93, 1
        %s232 = smul.addr %s231, 8
        %s233 = scalar_lea.vmem [#allocation2], %s232
        // Predicated region
        $region33: #{conv_unit.1} parent=31 // pred_check
          %p234 = pneg %p103
        $region34: #{conv_unit.1} parent=31 // pred_check_branch
          %236 = sbr.rel (%p234) target = $region36
        $region35: #{conv_unit.1} parent=31 // pred_region
          %238 = vsyncadd %s230, 0
          %s239 = smul.addr %s17, 8
          %s240 = scalar_lea.hbm %s3, %s239
          %s242 = sshll.u32 %s233, 4
          %s243 = int_to_ptr.vmem [resolvable:$true] %s242
          %s244 = sshll.u32 %s240, 4
          %s245 = int_to_ptr.hbm [resolvable:$true] %s244
          %247 = dma.vmem_to_hbm [thread:$0]  %s243, 128, %s245, %s230
        $region36: #{conv_unit.1} parent=31 // pred_fallthru
          _
      $region32: #{conv_unit.1} parent=5 // pred_fallthru
        _
      %p248 = scmp.le.s32.totalorder 2, %s12
      // Predicated region
      $region37: #{conv_unit.1} parent=5 // pred_check
        %p249 = pneg %p248
      $region38: #{conv_unit.1} parent=5 // pred_check_branch
        %251 = sbr.rel (%p249) target = $region40
      $region39: #{conv_unit.1} parent=5 // pred_region
        %s252 = ssub.s32 %s12, 2
        // Predicated region
        $region41: #{conv_unit.1} parent=39 // pred_check
          %p253 = pneg %p109
        $region42: #{conv_unit.1} parent=39 // pred_check_branch
          %255 = sbr.rel (%p253) target = $region44
        $region43: #{conv_unit.1} parent=39 // pred_region
          %s256 = sand.u32 %s94, 1
          %s257 = scalar_lea.sflag [#allocation3], %s256
          %s258 = sand.u32 %s94, 1
          %s259 = smul.addr %s258, 8
          %s260 = scalar_lea.vmem [#allocation2], %s259
          %262 = dma.done %s257, 128
        $region44: #{conv_unit.1} parent=39 // pred_fallthru
          _
      $region40: #{conv_unit.1} parent=5 // pred_fallthru
        _
    $region6: #{conv_unit.1} parent=1 // loop_footer
      %s16 = sadd.s32 1, %s12
    $region7: #{conv_unit.1} parent=1 // loop_footer_branch
      %11 = sbr.rel target = $region3
    $region8: #{conv_unit.1} parent=1 // loop_exit
      _
    %263 = vsyncpa [#allocation3], 1
    %s264 = scalar_lea.sflag [#allocation3], 1
    %265 = vsyncpa %s264, 1

</llo_original>
